<compile_context>
chip_gen: v6e
topology: v6e:2x2x1
jax: 0.10.0
libtpu: 0.0.40
codegen_flags: <defaults>
</compile_context>

<pallas_src>
import math

import jax
import jax.numpy as jnp
from jax.experimental import pallas as pl
from jax.experimental.pallas import tpu as pltpu


def _next_pow2(n: int) -> int:
    return 1 if n <= 1 else 1 << (int(n) - 1).bit_length()


def _cdiv(a: int, b: int) -> int:
    return -(-a // b)


def _vmem_budget():
    """Generation-aware VMEM sizing.

    Returns (vmem_limit_bytes, tile_budget_bytes).
      v5e/v6e (128 MiB physical) -> limit ~96 MiB, tile budget ~81 MiB
      v7x     ( 64 MiB per TC)   -> limit ~48 MiB, tile budget ~40 MiB
    Falls back to the v7x-safe numbers if the query is unavailable.
    """
    cap = None
    try:
        cap = getattr(pltpu.get_tpu_info(), "vmem_capacity_bytes", None)
    except Exception:
        cap = None
    if not cap or int(cap) <= 0:
        cap = 64 << 20
    cap = int(cap)
    vmem_limit = min((cap * 3) // 4, 100 << 20)
    budget = (vmem_limit * 17) // 20   # ~15% headroom for compiler scratch
    return vmem_limit, budget


def _compress_kernel_tail(band_main_ref, band_tail_ref, pe_ref,
                          x_main_ref, x_tail_ref, y_ref):
    # band_main_ref: (tm, C)      shared banded weights for the main chunk
    # band_tail_ref: (tm, o_pad)  shared banded weights for the overhang
    # pe_ref       : (1, H*D)     f32 bias = sum_r weight[r] * pe[r, :] (tiled over heads)
    # x_main_ref   : (C, H*D)     x rows [t*C, (t+1)*C)
    # x_tail_ref   : (o_pad, H*D) x rows [(t+1)*C, (t+1)*C + o_pad) (clamped at seq end)
    # y_ref        : (tm, H*D)    output rows [t*tm, t*tm + tm)
    acc = jnp.dot(band_main_ref[...], x_main_ref[...],
                  preferred_element_type=jnp.float32)
    acc = acc + jnp.dot(band_tail_ref[...], x_tail_ref[...],
                        preferred_element_type=jnp.float32)
    y_ref[...] = (acc + pe_ref[...]).astype(y_ref.dtype)


def _compress_kernel_notail(band_main_ref, pe_ref, x_main_ref, y_ref):
    # Non-overlapping compression (K == stride): single x stream, single dot.
    acc = jnp.dot(band_main_ref[...], x_main_ref[...],
                  preferred_element_type=jnp.float32)
    y_ref[...] = (acc + pe_ref[...]).astype(y_ref.dtype)


def compress_kv(x, weight, pe, stride):
    """Pallas implementation of block_compress forward.

    x:      (B, N, H, D)
    weight: (K,)
    pe:     (K, D)
    returns (B, M, H, D) with M = (N - K)//stride + 1
    """
    B, N, H, D = x.shape
    K = int(weight.shape[0])
    stride = int(stride)
    assert K % stride == 0
    assert math.log2(K).is_integer()
    assert N >= K
    M = (N - K) // stride + 1
    assert M > 0
    HD = H * D
    x_bytes = jnp.dtype(x.dtype).itemsize

    # dtype-aware sublane floor (f32: 8, bf16: 16, int8/fp8: 32).
    sub_min = 8 if x_bytes >= 4 else (16 if x_bytes == 2 else 32)

    has_tail = K > stride
    # Overhang block width: power of two, >= K - stride, sublane-aligned.
    o_pad = max(sub_min, _next_pow2(K - stride)) if has_tail else 0

    # M-tile size: power of two, >= sublane floor, capped at 128.
    tm = max(sub_min, min(128, _next_pow2(M)))
    if has_tail:
        while tm * stride < o_pad:     # keep o_pad | tm*stride (all pow2; stride | K pow2)
            tm *= 2

    vmem_limit, budget = _vmem_budget()

    def _vmem_est(t):
        c = t * stride
        total = 2 * (c + t) * HD * x_bytes       # x main in + y out (double buffered)
        total += 2 * t * c * x_bytes             # band_main (double buffered)
        if has_tail:
            total += 2 * o_pad * HD * x_bytes    # x overhang (double buffered)
            total += 2 * t * o_pad * x_bytes     # band_tail (double buffered)
        total += 2 * HD * 4                      # pe bias
        return total

    def _can_halve(t):
        if t // 2 < sub_min:
            return False
        if has_tail and (t // 2) * stride < o_pad:
            return False
        return True

    while _can_halve(tm) and _vmem_est(tm) > budget:
        tm //= 2

    # v7x has 2 TensorCores sharing HBM: keep >= 2 grid steps when possible.
    if B == 1 and _cdiv(M, tm) <= 1 and M > tm // 2 and _can_halve(tm):
        tm //= 2

    C = tm * stride                     # main x-chunk width per tile
    num_tiles = _cdiv(M, tm)

    # NaN-safety: pad x along N (zeros) so every fetched input block lies
    # fully inside the array -- no partially fetched VMEM block can carry
    # stale NaN/Inf into a 0*garbage product. No-op for aligned shapes.
    if has_tail:
        n_pad_to = max(num_tiles * C, _cdiv(N, o_pad) * o_pad)
    else:
        n_pad_to = num_tiles * C
    n_pad_to = max(n_pad_to, N)

    # Free reshape: heads fused into the lane dimension. No transposes.
    # TODO(synk): HD < 128 (e.g. one KV head with D=64) gives masked sub-lane
    #             output stores; pack heads/seq in the wrapper if that matters.
    x_f = x.reshape(B, N, HD)
    if n_pad_to > N:
        x_f = jnp.pad(x_f, ((0, 0), (0, n_pad_to - N), (0, 0)))
    Np = n_pad_to

    # --- glue: small shared band / bias construction (O(tm * C)) ---
    w_f32 = weight.astype(jnp.float32)
    r = jnp.arange(tm)[:, None]
    c_main = jnp.arange(C)[None, :]
    widx_m = c_main - r * stride                                   # (tm, C)
    band_main = jnp.where((widx_m >= 0) & (widx_m < K),
                          w_f32[jnp.clip(widx_m, 0, K - 1)], 0.0)
    band_main = band_main.astype(x.dtype)
    if has_tail:
        c_tail = jnp.arange(o_pad)[None, :]
        widx_t = C + c_tail - r * stride                           # (tm, o_pad)
        band_tail = jnp.where((widx_t >= 0) & (widx_t < K),
                              w_f32[jnp.clip(widx_t, 0, K - 1)], 0.0)
        band_tail = band_tail.astype(x.dtype)

    pe_sum = jnp.sum(w_f32[:, None] * pe.astype(jnp.float32), axis=0)   # (D,)
    pe_sum = jnp.tile(pe_sum, (H,)).reshape(1, HD)                      # (1, H*D) f32

    extra = o_pad if has_tail else 0
    flops = 2 * B * num_tiles * tm * (C + extra) * HD
    bytes_accessed = x_bytes * B * HD * (num_tiles * (C + extra) + M)
    cost = pl.CostEstimate(flops=int(flops), transcendentals=0,
                           bytes_accessed=int(bytes_accessed))

    cparams = pltpu.CompilerParams(
        dimension_semantics=("parallel", "parallel"),
        vmem_limit_bytes=int(vmem_limit))

    out_spec = pl.BlockSpec((None, tm, HD), lambda b, t: (b, t, 0))

    if has_tail:
        ratio = C // o_pad              # overhang block index per tile step
        max_tail_idx = Np // o_pad - 1

        def _tail_index(b, t):
            # Overhang block of the NEXT chunk; clamp at the (padded) end.
            # Clamped/zero-padded rows are only consumed with zero band
            # weight by valid output rows (m < M).
            return (b, jnp.minimum((t + 1) * ratio, max_tail_idx), 0)

        grid_spec = pltpu.PrefetchScalarGridSpec(
            num_scalar_prefetch=0,
            grid=(B, num_tiles),
            in_specs=[
                pl.BlockSpec((tm, C), lambda b, t: (0, 0)),          # band_main
                pl.BlockSpec((tm, o_pad), lambda b, t: (0, 0)),      # band_tail
                pl.BlockSpec((1, HD), lambda b, t: (0, 0)),          # pe bias
                pl.BlockSpec((None, C, HD), lambda b, t: (b, t, 0)),  # x main chunk
                pl.BlockSpec((None, o_pad, HD), _tail_index),          # x overhang
            ],
            out_specs=out_spec)
        y_f = pl.pallas_call(
            _compress_kernel_tail,
            out_shape=jax.ShapeDtypeStruct((B, M, HD), x.dtype),
            grid_spec=grid_spec,
            compiler_params=cparams,
            cost_estimate=cost,
        )(band_main, band_tail, pe_sum, x_f, x_f)
    else:
        grid_spec = pltpu.PrefetchScalarGridSpec(
            num_scalar_prefetch=0,
            grid=(B, num_tiles),
            in_specs=[
                pl.BlockSpec((tm, C), lambda b, t: (0, 0)),          # band_main
                pl.BlockSpec((1, HD), lambda b, t: (0, 0)),          # pe bias
                pl.BlockSpec((None, C, HD), lambda b, t: (b, t, 0)),  # x main chunk
            ],
            out_specs=out_spec)
        y_f = pl.pallas_call(
            _compress_kernel_notail,
            out_shape=jax.ShapeDtypeStruct((B, M, HD), x.dtype),
            grid_spec=grid_spec,
            compiler_params=cparams,
            cost_estimate=cost,
        )(band_main, pe_sum, x_f)

    # Free reshape back to (B, M, H, D).
    return y_f.reshape(B, M, H, D)


class CompressKV:
    """JAX port of the PyTorch CompressKV module (forward only)."""

    def __init__(self, head_dim, kernel_size, stride, key):
        self.head_dim = head_dim
        self.kernel_size = kernel_size
        self.stride = stride
        k_pe, k_w = jax.random.split(key)
        self.pe = jax.random.normal(k_pe, (kernel_size, head_dim), jnp.float32)
        self.weight = jax.random.normal(k_w, (kernel_size,), jnp.float32)

    def __call__(self, x):
        return compress_kv(x, self.weight, self.pe, self.stride)


def _reference(x, weight, pe, stride):
    B, N, H, D = x.shape
    K = weight.shape[0]
    M = (N - K) // stride + 1
    xf = x.astype(jnp.float32)
    pef = pe.astype(jnp.float32)
    wf = weight.astype(jnp.float32)
    ys = []
    for m in range(M):
        xs = xf[:, m * stride:m * stride + K]                   # (B, K, H, D)
        y = jnp.sum((xs + pef[None, :, None, :]) * wf[None, :, None, None],
                    axis=1)                                     # (B, H, D)
        ys.append(y)
    return jnp.stack(ys, axis=1).astype(x.dtype)                # (B, M, H, D)


if __name__ == "__main__":
    key = jax.random.PRNGKey(0)
    k_x, k_mod = jax.random.split(key)

    # Small shapes consistent with the module's assertions:
    # kernel_size power of 2, divisible by stride, N >= kernel_size.
    B, N, H, D = 2, 64, 4, 32
    kernel_size, stride = 8, 4

    x = jax.random.normal(k_x, (B, N, H, D), jnp.float32)
    mod = CompressKV(head_dim=D, kernel_size=kernel_size, stride=stride,
                     key=k_mod)

    y = mod(x)
    y = jax.block_until_ready(y)

    y_ref = _reference(x, mod.weight, mod.pe, stride)
    assert y.shape == y_ref.shape, (y.shape, y_ref.shape)
    assert jnp.allclose(y, y_ref, atol=1e-3, rtol=1e-3), "mismatch vs reference"

    print("KERNEL_OK")
</pallas_src>

<mosaic_0001>
module attributes {stable_mosaic.version = 11 : i64} {
  func.func @_compress_kernel_tail(%arg0: i32, %arg1: i32, %arg2: memref<16x64xf32, #tpu.memory_space<vmem>>, %arg3: memref<16x8xf32, #tpu.memory_space<vmem>>, %arg4: memref<1x128xf32, #tpu.memory_space<vmem>>, %arg5: memref<1x64x128xf32, #tpu.memory_space<vmem>>, %arg6: memref<1x8x128xf32, #tpu.memory_space<vmem>>, %arg7: memref<1x16x128xf32, #tpu.memory_space<vmem>>) attributes {dimension_semantics = [#tpu.dimension_semantics<parallel>, #tpu.dimension_semantics<parallel>], iteration_bounds = array<i64: 2, 1>, scalar_prefetch = 0 : i64, scratch_operands = 0 : i64, tpu.core_type = #tpu.core_type<tc>, window_params = [{pipeline_mode = #tpu.pipeline_mode<synchronous>, transform_indices = @transform_0, window_bounds = array<i64: 16, 64>}, {pipeline_mode = #tpu.pipeline_mode<synchronous>, transform_indices = @transform_1, window_bounds = array<i64: 16, 8>}, {pipeline_mode = #tpu.pipeline_mode<synchronous>, transform_indices = @transform_2, window_bounds = array<i64: 1, 128>}, {transform_indices = @transform_3, window_bounds = array<i64: 1, 64, 128>}, {transform_indices = @transform_4, window_bounds = array<i64: 1, 8, 128>}, {transform_indices = @transform_5, window_bounds = array<i64: 1, 16, 128>}]} {
    %c0 = arith.constant 0 : index
    %c0_0 = arith.constant 0 : index
    %0 = vector.load %arg2[%c0, %c0_0] : memref<16x64xf32, #tpu.memory_space<vmem>>, vector<16x64xf32>
    %c0_1 = arith.constant 0 : index
    %c0_2 = arith.constant 0 : index
    %c0_3 = arith.constant 0 : index
    %1 = vector.load %arg5[%c0_1, %c0_2, %c0_3] : memref<1x64x128xf32, #tpu.memory_space<vmem>>, vector<1x64x128xf32>
    %2 = vector.shape_cast %1 : vector<1x64x128xf32> to vector<64x128xf32>
    %cst = arith.constant dense<0.000000e+00> : vector<16x128xf32>
    %3 = tpu.matmul %0, %2, %cst {dimension_numbers = #tpu.dot_dimension_numbers<[1], [0], [0], [1], [0, 0, 1, 1], [], []>} : vector<16x64xf32>, vector<64x128xf32>, vector<16x128xf32> -> vector<16x128xf32>
    %c0_4 = arith.constant 0 : index
    %c0_5 = arith.constant 0 : index
    %4 = vector.load %arg3[%c0_4, %c0_5] : memref<16x8xf32, #tpu.memory_space<vmem>>, vector<16x8xf32>
    %c0_6 = arith.constant 0 : index
    %c0_7 = arith.constant 0 : index
    %c0_8 = arith.constant 0 : index
    %5 = vector.load %arg6[%c0_6, %c0_7, %c0_8] : memref<1x8x128xf32, #tpu.memory_space<vmem>>, vector<1x8x128xf32>
    %6 = vector.shape_cast %5 : vector<1x8x128xf32> to vector<8x128xf32>
    %cst_9 = arith.constant dense<0.000000e+00> : vector<16x128xf32>
    %7 = tpu.matmul %4, %6, %cst_9 {dimension_numbers = #tpu.dot_dimension_numbers<[1], [0], [0], [1], [0, 0, 1, 1], [], []>} : vector<16x8xf32>, vector<8x128xf32>, vector<16x128xf32> -> vector<16x128xf32>
    %8 = arith.addf %3, %7 : vector<16x128xf32>
    %c0_10 = arith.constant 0 : index
    %c0_11 = arith.constant 0 : index
    %9 = vector.load %arg4[%c0_10, %c0_11] : memref<1x128xf32, #tpu.memory_space<vmem>>, vector<1x128xf32>
    %10 = vector.broadcast %9 : vector<1x128xf32> to vector<16x128xf32>
    %11 = arith.addf %8, %10 : vector<16x128xf32>
    %c0_12 = arith.constant 0 : index
    %c0_13 = arith.constant 0 : index
    %c0_14 = arith.constant 0 : index
    %12 = vector.load %arg7[%c0_12, %c0_13, %c0_14] : memref<1x16x128xf32, #tpu.memory_space<vmem>>, vector<1x16x128xf32>
    %13 = vector.shape_cast %12 : vector<1x16x128xf32> to vector<16x128xf32>
    %14 = vector.shape_cast %11 : vector<16x128xf32> to vector<1x16x128xf32>
    tpu.vector_store %arg7[%c0_12, %c0_13, %c0_14], %14 {strides = array<i32>} : memref<1x16x128xf32, #tpu.memory_space<vmem>>, vector<1x16x128xf32>,
    return
  }
  func.func @transform_0(%arg0: i32, %arg1: i32) -> (i32, i32) {
    %c0_i32 = arith.constant 0 : i32
    %c0_i32_0 = arith.constant 0 : i32
    %c0_i32_1 = arith.constant 0 : i32
    return %c0_i32, %c0_i32_0 : i32, i32
  }
  func.func @transform_1(%arg0: i32, %arg1: i32) -> (i32, i32) {
    %c0_i32 = arith.constant 0 : i32
    %c0_i32_0 = arith.constant 0 : i32
    %c0_i32_1 = arith.constant 0 : i32
    return %c0_i32, %c0_i32_0 : i32, i32
  }
  func.func @transform_2(%arg0: i32, %arg1: i32) -> (i32, i32) {
    %c0_i32 = arith.constant 0 : i32
    %c0_i32_0 = arith.constant 0 : i32
    %c0_i32_1 = arith.constant 0 : i32
    return %c0_i32, %c0_i32_0 : i32, i32
  }
  func.func @transform_3(%arg0: i32, %arg1: i32) -> (i32, i32, i32) {
    %c0_i32 = arith.constant 0 : i32
    %c0_i32_0 = arith.constant 0 : i32
    return %arg0, %arg1, %c0_i32 : i32, i32, i32
  }
  func.func @transform_4(%arg0: i32, %arg1: i32) -> (i32, i32, i32) {
    %c1_i32 = arith.constant 1 : i32
    %0 = arith.addi %arg1, %c1_i32 : i32
    %c8_i32 = arith.constant 8 : i32
    %1 = arith.muli %0, %c8_i32 : i32
    %c7_i32 = arith.constant 7 : i32
    %2 = arith.minsi %1, %c7_i32 : i32
    %c0_i32 = arith.constant 0 : i32
    %c0_i32_0 = arith.constant 0 : i32
    return %arg0, %2, %c0_i32 : i32, i32, i32
  }
  func.func @transform_5(%arg0: i32, %arg1: i32) -> (i32, i32, i32) {
    %c0_i32 = arith.constant 0 : i32
    %c0_i32_0 = arith.constant 0 : i32
    return %arg0, %arg1, %c0_i32 : i32, i32, i32
  }
}

</mosaic_0001>

<llo_original>
// kernel: tpu_custom_call.1
$region0: #{tpu_custom_call.1}
  #allocation0 [shape = 'u32[]', space=smem, size = 0x4, offset = 0x4, fixed_abs, tag = 'smem constant byte address 0x4 - core index']
  #allocation1 [shape = 'u32[144,128]{1,0:T(1,128)}', space=vmem, size = 0x12000, scoped, tag = 'internal scratch']
  %s0 = inlined_call_operand.vmem [shape: f32[16,64], index: 0, kind: input, shape index: {}]
  %s1 = inlined_call_operand.vmem [shape: f32[16,8], index: 1, kind: input, shape index: {}]
  %s2 = inlined_call_operand.vmem [shape: f32[1,128], index: 2, kind: input, shape index: {}]
  %s3 = inlined_call_operand.hbm [shape: f32[2,64,128], index: 3, kind: input, shape index: {}]
  %s4 = inlined_call_operand.hbm [shape: f32[2,64,128], index: 4, kind: input, shape index: {}]
  %s5 = inlined_call_operand.vmem [shape: f32[2,15,128], index: 5, kind: output, shape index: {}]
  %s6 = sld [smem:[#allocation0]]
  $region61: #{tpu_custom_call.1} parent=0
    _
  %s8 = ssub.s32 1, %s6
  %s9 = scalar_select 0, %s8, %s6
  $region1: #{tpu_custom_call.1} parent=0
    #allocation2 [shape = 'u8[65536]{0}', space=vmem, size = 0x10000, scoped, tag = 'input window, operand 3']
    #allocation3 [shape = 's32[2]{0}', space=sflag, size = 0x8, scoped, tag = 'scoped memory for tpu_custom_call.1']
    #allocation4 [shape = 'u8[8192]{0}', space=vmem, size = 0x2000, scoped, tag = 'input window, operand 4']
    #allocation5 [shape = 's32[2]{0}', space=sflag, size = 0x8, scoped, tag = 'scoped memory for tpu_custom_call.1']
    %10 = vsyncpa [#allocation3], 0
    %s11 = scalar_lea.sflag [#allocation3], 1
    %12 = vsyncpa %s11, 0
    %13 = vsyncpa [#allocation5], 0
    %s14 = scalar_lea.sflag [#allocation5], 1
    %15 = vsyncpa %s14, 0
    loop: start=0, step=1, limit=4
    $region2: #{tpu_custom_call.1} parent=1 // loop_pre_header
      _
    $region3: #{tpu_custom_call.1} parent=1 // loop_header
      %s17 = sphi 0, %s21
      %p18 = scmp.ge.s32.totalorder %s17, 4
      %s24 = sphi 0, %s36
      %s25 = sphi 0, %s32
      %s26 = sphi 0, %s24
      %s27 = sphi 0, %s25
      %s28 = sphi 0, %s26
      %s29 = sphi 0, %s27
      %s37 = sphi 0, %s37
      %s39 = sphi 0, %s37
      %s40 = sphi 0, %s39
      %s54 = sphi 0, %s40
      %s58 = sphi 0, %s58
      %s60 = sphi 0, %s58
      %s61 = sphi 0, %s60
      %s75 = sphi 0, %s61
      %s79 = sphi 0, %s79
      %s81 = sphi 0, %s79
      %s82 = sphi 0, %s81
      %s96 = sphi 0, %s82
      %s104 = sphi 0, %s106
      %s107 = sphi 0, %s104
      %s108 = sphi 0, %s107
      %s124 = sphi 0, %s108
      %s140 = sphi 0, %s142
      %s143 = sphi 0, %s140
      %s144 = sphi 0, %s143
      %s160 = sphi 0, %s144
      %s168 = sphi 0, %s170
      %s171 = sphi 0, %s168
      %s172 = sphi 0, %s171
      %s188 = sphi 0, %s172
    $region4: #{tpu_custom_call.1} parent=1 // loop_header_branch
      %20 = sbr.rel (%p18) target = $region8
    $region5: #{tpu_custom_call.1} parent=1 // loop_body
      %s22 = ssub.s32 %s17, 1
      %s23 = ssub.s32 %s17, 2
      %s30 = sadd.s32 1, %s25
      %p31 = scmp.ge.s32.totalorder %s30, 1
      %s32 = scalar_select %p31, 0, %s30
      %s33 = sadd.s32 1, %s24
      %s34 = scalar_select %p31, %s33, %s24
      %p35 = scmp.ge.s32.totalorder %s34, 2
      %s36 = scalar_select %p35, 0, %s34
      %s38 = sadd.s32 %s37, 1
      %p41 = scmp.eq.s32.totalorder %s17, 1
      %p42 = scmp.ne.s32.totalorder %s37, %s39
      %p43 = scmp.eq.s32.totalorder %s17, 0
      %p44 = por %p42, %p43
      %p45 = scmp.ne.s32.totalorder %s37, %s39
      %p46 = scmp.eq.s32.totalorder %s22, 1
      %p47 = por %p45, %p46
      %p48 = scmp.ne.s32.totalorder %s39, %s40
      %p49 = scmp.eq.s32.totalorder %s22, 0
      %p50 = por %p48, %p49
      %p51 = scmp.ne.s32.totalorder %s39, %s40
      %p52 = scmp.eq.s32.totalorder %s23, 1
      %p53 = por %p51, %p52
      %p55 = scmp.ne.s32.totalorder %s40, %s54
      %p56 = scmp.eq.s32.totalorder %s23, 0
      %p57 = por %p55, %p56
      %s59 = sadd.s32 %s58, 1
      %p62 = scmp.eq.s32.totalorder %s17, 1
      %p63 = scmp.ne.s32.totalorder %s58, %s60
      %p64 = scmp.eq.s32.totalorder %s17, 0
      %p65 = por %p63, %p64
      %p66 = scmp.ne.s32.totalorder %s58, %s60
      %p67 = scmp.eq.s32.totalorder %s22, 1
      %p68 = por %p66, %p67
      %p69 = scmp.ne.s32.totalorder %s60, %s61
      %p70 = scmp.eq.s32.totalorder %s22, 0
      %p71 = por %p69, %p70
      %p72 = scmp.ne.s32.totalorder %s60, %s61
      %p73 = scmp.eq.s32.totalorder %s23, 1
      %p74 = por %p72, %p73
      %p76 = scmp.ne.s32.totalorder %s61, %s75
      %p77 = scmp.eq.s32.totalorder %s23, 0
      %p78 = por %p76, %p77
      %s80 = sadd.s32 %s79, 1
      %p83 = scmp.eq.s32.totalorder %s17, 1
      %p84 = scmp.ne.s32.totalorder %s79, %s81
      %p85 = scmp.eq.s32.totalorder %s17, 0
      %p86 = por %p84, %p85
      %p87 = scmp.ne.s32.totalorder %s79, %s81
      %p88 = scmp.eq.s32.totalorder %s22, 1
      %p89 = por %p87, %p88
      %p90 = scmp.ne.s32.totalorder %s81, %s82
      %p91 = scmp.eq.s32.totalorder %s22, 0
      %p92 = por %p90, %p91
      %p93 = scmp.ne.s32.totalorder %s81, %s82
      %p94 = scmp.eq.s32.totalorder %s23, 1
      %p95 = por %p93, %p94
      %p97 = scmp.ne.s32.totalorder %s82, %s96
      %p98 = scmp.eq.s32.totalorder %s23, 0
      %p99 = por %p97, %p98
      %s100 = ssub.s32 %s24, %s36
      %s101 = ssub.s32 %s25, %s32
      %s102 = sor.u32 %s100, %s101
      %p103 = scmp.eq.s32.totalorder %s102, 0
      %s105 = sadd.s32 %s104, 1
      %s106 = scalar_select %p103, %s104, %s105
      %p109 = pneg %p103
      %p110 = scmp.eq.s32.totalorder %s17, 1
      %p111 = por %p109, %p110
      %p112 = scmp.ne.s32.totalorder %s104, %s107
      %p113 = scmp.eq.s32.totalorder %s17, 0
      %p114 = por %p112, %p113
      %p115 = scmp.ne.s32.totalorder %s104, %s107
      %p116 = scmp.eq.s32.totalorder %s22, 1
      %p117 = por %p115, %p116
      %p118 = scmp.ne.s32.totalorder %s107, %s108
      %p119 = scmp.eq.s32.totalorder %s22, 0
      %p120 = por %p118, %p119
      %p121 = scmp.ne.s32.totalorder %s107, %s108
      %p122 = scmp.eq.s32.totalorder %s23, 1
      %p123 = por %p121, %p122
      %p125 = scmp.ne.s32.totalorder %s108, %s124
      %p126 = scmp.eq.s32.totalorder %s23, 0
      %p127 = por %p125, %p126
      %s128 = sadd.s32 %s25, 1
      %s129 = smul.u32 %s128, 8
      %p130 = scmp.lt.s32.totalorder %s129, 7
      %s131 = scalar_select %p130, %s129, 7
      %s132 = sadd.s32 %s32, 1
      %s133 = smul.u32 %s132, 8
      %p134 = scmp.lt.s32.totalorder %s133, 7
      %s135 = scalar_select %p134, %s133, 7
      %s136 = ssub.s32 %s24, %s36
      %s137 = ssub.s32 %s131, %s135
      %s138 = sor.u32 %s136, %s137
      %p139 = scmp.eq.s32.totalorder %s138, 0
      %s141 = sadd.s32 %s140, 1
      %s142 = scalar_select %p139, %s140, %s141
      %p145 = pneg %p139
      %p146 = scmp.eq.s32.totalorder %s17, 1
      %p147 = por %p145, %p146
      %p148 = scmp.ne.s32.totalorder %s140, %s143
      %p149 = scmp.eq.s32.totalorder %s17, 0
      %p150 = por %p148, %p149
      %p151 = scmp.ne.s32.totalorder %s140, %s143
      %p152 = scmp.eq.s32.totalorder %s22, 1
      %p153 = por %p151, %p152
      %p154 = scmp.ne.s32.totalorder %s143, %s144
      %p155 = scmp.eq.s32.totalorder %s22, 0
      %p156 = por %p154, %p155
      %p157 = scmp.ne.s32.totalorder %s143, %s144
      %p158 = scmp.eq.s32.totalorder %s23, 1
      %p159 = por %p157, %p158
      %p161 = scmp.ne.s32.totalorder %s144, %s160
      %p162 = scmp.eq.s32.totalorder %s23, 0
      %p163 = por %p161, %p162
      %s164 = ssub.s32 %s24, %s36
      %s165 = ssub.s32 %s25, %s32
      %s166 = sor.u32 %s164, %s165
      %p167 = scmp.eq.s32.totalorder %s166, 0
      %s169 = sadd.s32 %s168, 1
      %s170 = scalar_select %p167, %s168, %s169
      %p173 = pneg %p167
      %p174 = scmp.eq.s32.totalorder %s17, 1
      %p175 = por %p173, %p174
      %p176 = scmp.ne.s32.totalorder %s168, %s171
      %p177 = scmp.eq.s32.totalorder %s17, 0
      %p178 = por %p176, %p177
      %p179 = scmp.ne.s32.totalorder %s168, %s171
      %p180 = scmp.eq.s32.totalorder %s22, 1
      %p181 = por %p179, %p180
      %p182 = scmp.ne.s32.totalorder %s171, %s172
      %p183 = scmp.eq.s32.totalorder %s22, 0
      %p184 = por %p182, %p183
      %p185 = scmp.ne.s32.totalorder %s171, %s172
      %p186 = scmp.eq.s32.totalorder %s23, 1
      %p187 = por %p185, %p186
      %p189 = scmp.ne.s32.totalorder %s172, %s188
      %p190 = scmp.eq.s32.totalorder %s23, 0
      %p191 = por %p189, %p190
      %p192 = scmp.le.s32.totalorder 1, %s17
      %p193 = scmp.lt.s32.totalorder %s17, 3
      %p194 = pnand %p192, %p193
      %p195 = pneg %p194
      // Predicated region
      $region9: #{tpu_custom_call.1} parent=5 // pred_check
        _
      $region10: #{tpu_custom_call.1} parent=5 // pred_check_branch
        %197 = sbr.rel (%p194) target = $region12
      $region11: #{tpu_custom_call.1} parent=5 // pred_region
        %s198 = ssub.s32 %s17, 1
        // Predicated region
        $region13: #{tpu_custom_call.1} parent=11 // pred_check
          %p199 = pneg %p50
        $region14: #{tpu_custom_call.1} parent=11 // pred_check_branch
          %201 = sbr.rel (%p199) target = $region16
        $region15: #{tpu_custom_call.1} parent=11 // pred_region
          _
        $region16: #{tpu_custom_call.1} parent=11 // pred_fallthru
          _
        // Predicated region
        $region17: #{tpu_custom_call.1} parent=11 // pred_check
          %p202 = pneg %p71
        $region18: #{tpu_custom_call.1} parent=11 // pred_check_branch
          %204 = sbr.rel (%p202) target = $region20
        $region19: #{tpu_custom_call.1} parent=11 // pred_region
          _
        $region20: #{tpu_custom_call.1} parent=11 // pred_fallthru
          _
        // Predicated region
        $region21: #{tpu_custom_call.1} parent=11 // pred_check
          %p205 = pneg %p92
        $region22: #{tpu_custom_call.1} parent=11 // pred_check_branch
          %207 = sbr.rel (%p205) target = $region24
        $region23: #{tpu_custom_call.1} parent=11 // pred_region
          _
        $region24: #{tpu_custom_call.1} parent=11 // pred_fallthru
          _
      $region12: #{tpu_custom_call.1} parent=5 // pred_fallthru
        _
      %p208 = scmp.lt.s32.totalorder %s17, 2
      // Predicated region
      $region25: #{tpu_custom_call.1} parent=5 // pred_check
        %p209 = pneg %p208
      $region26: #{tpu_custom_call.1} parent=5 // pred_check_branch
        %211 = sbr.rel (%p209) target = $region28
      $region27: #{tpu_custom_call.1} parent=5 // pred_region
        // Predicated region
        $region29: #{tpu_custom_call.1} parent=27 // pred_check
          %p212 = pneg %p114
        $region30: #{tpu_custom_call.1} parent=27 // pred_check_branch
          %214 = sbr.rel (%p212) target = $region32
        $region31: #{tpu_custom_call.1} parent=27 // pred_region
          %s215 = sand.u32 %s104, 1
          %s216 = scalar_lea.sflag [#allocation3], %s215
          %s217 = sand.u32 %s104, 1
          %s218 = smul.addr %s217, 64
          %s219 = scalar_lea.vmem [#allocation2], %s218
          %s220 = smul.u32 8, %s25
          %s222 = ssub.s32 1024, 1024
          %223 = vsyncadd %s216, %s222
          %s224 = smul.addr %s24, 8
          %s225 = sadd.s32 %s220, %s224
          %s226 = smul.addr %s225, 128
          %s227 = scalar_lea.hbm %s3, %s226
          %s228 = sshll.u32 %s219, 4
          %s229 = int_to_ptr.vmem [resolvable:$true] %s228
          %234 = dma.hbm_to_vmem [thread:$0]  %s227, 1024, %s229, %s216, 128, 128, 8
        $region32: #{tpu_custom_call.1} parent=27 // pred_fallthru
          _
        // Predicated region
        $region33: #{tpu_custom_call.1} parent=27 // pred_check
          %p235 = pneg %p150
        $region34: #{tpu_custom_call.1} parent=27 // pred_check_branch
          %237 = sbr.rel (%p235) target = $region36
        $region35: #{tpu_custom_call.1} parent=27 // pred_region
          %s238 = sand.u32 %s140, 1
          %s239 = scalar_lea.sflag [#allocation5], %s238
          %s240 = sand.u32 %s140, 1
          %s241 = smul.addr %s240, 8
          %s242 = scalar_lea.vmem [#allocation4], %s241
          %s243 = sadd.s32 %s25, 1
          %s244 = smul.u32 %s243, 8
          %p245 = scmp.lt.s32.totalorder %s244, 7
          %s246 = scalar_select %p245, %s244, 7
          %s248 = ssub.s32 128, 128
          %249 = vsyncadd %s239, %s248
          %s250 = smul.addr %s24, 8
          %s251 = sadd.s32 %s246, %s250
          %s252 = smul.addr %s251, 128
          %s253 = scalar_lea.hbm %s4, %s252
          %s255 = sshll.u32 %s242, 4
          %s256 = int_to_ptr.vmem [resolvable:$true] %s255
          %258 = dma.hbm_to_vmem [thread:$0]  %s253, 128, %s256, %s239
        $region36: #{tpu_custom_call.1} parent=27 // pred_fallthru
          _
      $region28: #{tpu_custom_call.1} parent=5 // pred_fallthru
        _
      %p259 = scmp.le.s32.totalorder 1, %s17
      %p260 = scmp.lt.s32.totalorder %s17, 3
      %p261 = pnand %p259, %p260
      %p262 = pneg %p261
      // Predicated region
      $region37: #{tpu_custom_call.1} parent=5 // pred_check
        _
      $region38: #{tpu_custom_call.1} parent=5 // pred_check_branch
        %264 = sbr.rel (%p261) target = $region40
      $region39: #{tpu_custom_call.1} parent=5 // pred_region
        %s265 = ssub.s32 %s17, 1
        %s266 = sand.u32 %s107, 1
        %s267 = scalar_lea.sflag [#allocation3], %s266
        %s268 = sand.u32 %s107, 1
        %s269 = smul.addr %s268, 64
        %s270 = scalar_lea.vmem [#allocation2], %s269
        // Predicated region
        $region41: #{tpu_custom_call.1} parent=39 // pred_check
          %p271 = pneg %p120
        $region42: #{tpu_custom_call.1} parent=39 // pred_check_branch
          %273 = sbr.rel (%p271) target = $region44
        $region43: #{tpu_custom_call.1} parent=39 // pred_region
          %274 = dma.done %s267, 1024
        $region44: #{tpu_custom_call.1} parent=39 // pred_fallthru
          _
        %s275 = sand.u32 %s143, 1
        %s276 = scalar_lea.sflag [#allocation5], %s275
        %s277 = sand.u32 %s143, 1
        %s278 = smul.addr %s277, 8
        %s279 = scalar_lea.vmem [#allocation4], %s278
        // Predicated region
        $region45: #{tpu_custom_call.1} parent=39 // pred_check
          %p280 = pneg %p156
        $region46: #{tpu_custom_call.1} parent=39 // pred_check_branch
          %282 = sbr.rel (%p280) target = $region48
        $region47: #{tpu_custom_call.1} parent=39 // pred_region
          %283 = dma.done %s276, 128
        $region48: #{tpu_custom_call.1} parent=39 // pred_fallthru
          _
        %p284 = pneg %p50
        %p285 = pneg %p47
        %p286 = pneg %p71
        %p287 = pneg %p68
        %p288 = pneg %p92
        %p289 = pneg %p89
        %s290 = sand.u32 %s107, 1
        %s291 = scalar_lea.sflag [#allocation3], %s290
        %s292 = sand.u32 %s107, 1
        %s293 = smul.addr %s292, 64
        %s294 = scalar_lea.vmem [#allocation2], %s293
        %p295 = pneg %p120
        %p296 = pneg %p117
        %s297 = sand.u32 %s143, 1
        %s298 = scalar_lea.sflag [#allocation5], %s297
        %s299 = sand.u32 %s143, 1
        %s300 = smul.addr %s299, 8
        %s301 = scalar_lea.vmem [#allocation4], %s300
        %p302 = pneg %p156
        %p303 = pneg %p153
        %p304 = pneg %p184
        %p305 = pneg %p181
        %s306 = smul.u32 2, %s27
        %p307 = scmp.lt.s32.totalorder %s26, 1
        %s308 = scalar_select %p307, %s26, 1
        %p309 = scmp.lt.s32.totalorder %s306, 1
        %s310 = scalar_select %p309, %s306, 1
        %s311 = smul.addr %s308, 2
        %s312 = sadd.s32 %s310, %s311
        %s313 = smul.addr %s312, 8
        %s314 = scalar_lea.vmem %s5, %s313
        %s315 = smul.u32 8, %s27
        %s316 = sadd.s32 %s27, 1
        %s317 = smul.u32 %s316, 8
        %p318 = scmp.lt.s32.totalorder %s317, 7
        %s319 = scalar_select %p318, %s317, 7
        %s320 = smul.u32 2, %s27
        %p321 = scmp.lt.s32.totalorder %s26, 1
        %s322 = scalar_select %p321, %s26, 1
        %p323 = scmp.lt.s32.totalorder %s320, 1
        %s324 = scalar_select %p323, %s320, 1
        %s325 = smul.addr %s322, 2
        %s326 = sadd.s32 %s324, %s325
        %s327 = smul.addr %s326, 8
        %s328 = scalar_lea.vmem %s5, %s327
        %s329 = smul.u32 2, %s27
        %v330 = vld [vmem:[%s0] sm:$0xff]
        %v331 = vld [vmem:[%s0 + $0x8] sm:$0xff]
        %v332 = vld [vmem:[%s270] sm:$0xff]
        %v333 = vld [vmem:[%s270 + $0x8] sm:$0xff]
        %v334 = vld [vmem:[%s270 + $0x10] sm:$0xff]
        %v335 = vld [vmem:[%s270 + $0x18] sm:$0xff]
        %v336 = vld [vmem:[%s270 + $0x20] sm:$0xff]
        %v337 = vld [vmem:[%s270 + $0x28] sm:$0xff]
        %v338 = vld [vmem:[%s270 + $0x30] sm:$0xff]
        %v339 = vld [vmem:[%s270 + $0x38] sm:$0xff]
        %v340 = vld [vmem:[%s1] sm:$0xff]
        %v341 = vld [vmem:[%s1 + $0x8] sm:$0xff]
        %v342 = vld [vmem:[%s279] sm:$0xff]
        %vm343 = vcmask 64512
        %v345 = vsel %vm343, %v340, 0
        %v348 = vsel %vm343, %v341, 0
        %350 = vmatprep.subr.mxu0 0.0
        %351 = vmatpush1.msra.mxu0 0.0
        %352 = vmatprep.subr.mxu0 0.0
        %353 = vmatpush1.msra.mxu0 0.0
        %354 = vmatprep.subr.mxu0 0.0
        %355 = vmatpush1.msra.mxu0 0.0
        %356 = vmatprep.subr.mxu0 0.0
        %357 = vmatpush1.msra.mxu0 0.0
        %358 = vmatprep.subr.mxu0 0.0
        %359 = vmatpush1.msra.mxu0 0.0
        %360 = vmatprep.subr.mxu0 0.0
        %361 = vmatpush1.msra.mxu0 0.0
        %362 = vmatprep.subr.mxu0 0.0
        %363 = vmatpush1.msra.mxu0 0.0
        %364 = vmatprep.subr.mxu0 0.0
        %365 = vmatpush1.msra.mxu0 0.0
        %366 = vmatprep.subr.mxu0 0.0
        %367 = vmatpush1.msra.mxu0 0.0
        %368 = vmatprep.subr.mxu0 0.0
        %369 = vmatpush1.msra.mxu0 0.0
        %370 = vmatprep.subr.mxu0 0.0
        %371 = vmatpush1.msra.mxu0 0.0
        %372 = vmatprep.subr.mxu0 0.0
        %373 = vmatpush1.msra.mxu0 0.0
        %374 = vmatprep.subr.mxu0 0.0
        %375 = vmatpush1.msra.mxu0 0.0
        %376 = vmatprep.subr.mxu0 0.0
        %377 = vmatpush1.msra.mxu0 0.0
        %378 = vmatprep.subr.mxu0 0.0
        %379 = vmatpush1.msra.mxu0 0.0
        %380 = vmatprep.subr.mxu0 0.0
        %381 = vmatpush1.msra.mxu0 %v342
        %382 = vmatprep.subr.mxu0 0.0
        %383 = vmatpush2.msra.mxu0 0.0
        %384 = vmatprep.subr.mxu0 0.0
        %385 = vmatpush2.msra.mxu0 0.0
        %386 = vmatprep.subr.mxu0 0.0
        %387 = vmatpush2.msra.mxu0 0.0
        %388 = vmatprep.subr.mxu0 0.0
        %389 = vmatpush2.msra.mxu0 0.0
        %390 = vmatprep.subr.mxu0 0.0
        %391 = vmatpush2.msra.mxu0 0.0
        %392 = vmatprep.subr.mxu0 0.0
        %393 = vmatpush2.msra.mxu0 0.0
        %394 = vmatprep.subr.mxu0 0.0
        %395 = vmatpush2.msra.mxu0 0.0
        %396 = vmatprep.subr.mxu0 0.0
        %397 = vmatpush2.msra.mxu0 0.0
        %398 = vmatprep.subr.mxu0 0.0
        %399 = vmatpush2.msra.mxu0 0.0
        %400 = vmatprep.subr.mxu0 0.0
        %401 = vmatpush2.msra.mxu0 0.0
        %402 = vmatprep.subr.mxu0 0.0
        %403 = vmatpush2.msra.mxu0 0.0
        %404 = vmatprep.subr.mxu0 0.0
        %405 = vmatpush2.msra.mxu0 0.0
        %406 = vmatprep.subr.mxu0 0.0
        %407 = vmatpush2.msra.mxu0 0.0
        %408 = vmatprep.subr.mxu0 0.0
        %409 = vmatpush2.msra.mxu0 0.0
        %410 = vmatprep.subr.mxu0 0.0
        %411 = vmatpush2.msra.mxu0 0.0
        %412 = vmatprep.subr.mxu0 0.0
        %413 = vmatpush2.msra.mxu0 0.0
        %414 = vmatprep.mubr.f32.mxu0 0.0
        %415 = vmatmul.mubr.f32.gmra.mxu0 %v345
        %v416 = vpop.f32.mrf.mxu0
        %v417 = vadd.f32 0.0, %v416
        %v418 = vpop.f32.mrf.mxu0
        %419 = vmatprep.mubr.f32.mxu0 0.0
        %420 = vmatmul.mubr.f32.gmra.mxu0 %v348
        %v421 = vpop.f32.mrf.mxu0
        %v422 = vadd.f32 0.0, %v421
        %v423 = vpop.f32.mrf.mxu0
        %424 = vdwg.mxu0
        %vm425 = vcmask 523264
        %v427 = vsel %vm425, %v330, 0
        %v430 = vsel %vm425, %v331, 0
        %432 = vmatprep.subr.mxu0 0.0
        %433 = vmatpush1.msra.mxu0 0.0
        %434 = vmatprep.subr.mxu0 0.0
        %435 = vmatpush1.msra.mxu0 0.0
        %436 = vmatprep.subr.mxu0 0.0
        %437 = vmatpush1.msra.mxu0 0.0
        %438 = vmatprep.subr.mxu0 0.0
        %439 = vmatpush1.msra.mxu0 0.0
        %440 = vmatprep.subr.mxu0 0.0
        %441 = vmatpush1.msra.mxu0 0.0
        %442 = vmatprep.subr.mxu0 0.0
        %443 = vmatpush1.msra.mxu0 0.0
        %444 = vmatprep.subr.mxu0 0.0
        %445 = vmatpush1.msra.mxu0 0.0
        %446 = vmatprep.subr.mxu0 0.0
        %447 = vmatpush1.msra.mxu0 0.0
        %448 = vmatprep.subr.mxu0 0.0
        %449 = vmatpush1.msra.mxu0 %v339
        %450 = vmatprep.subr.mxu0 0.0
        %451 = vmatpush1.msra.mxu0 %v338
        %452 = vmatprep.subr.mxu0 0.0
        %453 = vmatpush1.msra.mxu0 %v337
        %454 = vmatprep.subr.mxu0 0.0
        %455 = vmatpush1.msra.mxu0 %v336
        %456 = vmatprep.subr.mxu0 0.0
        %457 = vmatpush1.msra.mxu0 %v335
        %458 = vmatprep.subr.mxu0 0.0
        %459 = vmatpush1.msra.mxu0 %v334
        %460 = vmatprep.subr.mxu0 0.0
        %461 = vmatpush1.msra.mxu0 %v333
        %462 = vmatprep.subr.mxu0 0.0
        %463 = vmatpush1.msra.mxu0 %v332
        %464 = vmatprep.subr.mxu0 0.0
        %465 = vmatpush2.msra.mxu0 0.0
        %466 = vmatprep.subr.mxu0 0.0
        %467 = vmatpush2.msra.mxu0 0.0
        %468 = vmatprep.subr.mxu0 0.0
        %469 = vmatpush2.msra.mxu0 0.0
        %470 = vmatprep.subr.mxu0 0.0
        %471 = vmatpush2.msra.mxu0 0.0
        %472 = vmatprep.subr.mxu0 0.0
        %473 = vmatpush2.msra.mxu0 0.0
        %474 = vmatprep.subr.mxu0 0.0
        %475 = vmatpush2.msra.mxu0 0.0
        %476 = vmatprep.subr.mxu0 0.0
        %477 = vmatpush2.msra.mxu0 0.0
        %478 = vmatprep.subr.mxu0 0.0
        %479 = vmatpush2.msra.mxu0 0.0
        %480 = vmatprep.subr.mxu0 0.0
        %481 = vmatpush2.msra.mxu0 0.0
        %482 = vmatprep.subr.mxu0 0.0
        %483 = vmatpush2.msra.mxu0 0.0
        %484 = vmatprep.subr.mxu0 0.0
        %485 = vmatpush2.msra.mxu0 0.0
        %486 = vmatprep.subr.mxu0 0.0
        %487 = vmatpush2.msra.mxu0 0.0
        %488 = vmatprep.subr.mxu0 0.0
        %489 = vmatpush2.msra.mxu0 0.0
        %490 = vmatprep.subr.mxu0 0.0
        %491 = vmatpush2.msra.mxu0 0.0
        %492 = vmatprep.subr.mxu0 0.0
        %493 = vmatpush2.msra.mxu0 0.0
        %494 = vmatprep.subr.mxu0 0.0
        %495 = vmatpush2.msra.mxu0 0.0
        %496 = vmatprep.mubr.f32.mxu0 0.0
        %497 = vmatmul.mubr.f32.gmra.mxu0 %v427
        %v498 = vpop.f32.mrf.mxu0
        %v499 = vadd.f32 %v417, %v498
        %v500 = vpop.f32.mrf.mxu0
        %501 = vmatprep.mubr.f32.mxu0 0.0
        %502 = vmatmul.mubr.f32.gmra.mxu0 %v430
        %v503 = vpop.f32.mrf.mxu0
        %v504 = vadd.f32 %v422, %v503
        %v505 = vpop.f32.mrf.mxu0
        %506 = vdwg.mxu0
        %v507 = vld [vmem:[%s2] sm:$0x1]
        %v509 = vlaneseq
        %v510 = vshrl.u32 %v509, 7
        %v511 = vsub.s32 0, %v510
        %v512 = vrot.slane %v507, %v511
        %v514 = vadd.f32 %v499, %v512
        %v515 = vadd.f32 %v504, %v512
        %516 = vst [vmem:[%s328] sm:$0xff] %v514
        %517 = vst [vmem:[%s328 + $0x8] sm:$0xff] %v515
        %s518 = smul.u32 2, %s27
        %p519 = scmp.lt.s32.totalorder %s26, 1
        %s520 = scalar_select %p519, %s26, 1
        %p521 = scmp.lt.s32.totalorder %s518, 1
        %s522 = scalar_select %p521, %s518, 1
        %s523 = smul.addr %s520, 2
        %s524 = sadd.s32 %s522, %s523
        %s525 = smul.addr %s524, 8
        %s526 = scalar_lea.vmem %s5, %s525
        // Predicated region
        $region49: #{tpu_custom_call.1} parent=39 // pred_check
          %p527 = pneg %p181
        $region50: #{tpu_custom_call.1} parent=39 // pred_check_branch
          %529 = sbr.rel (%p527) target = $region52
        $region51: #{tpu_custom_call.1} parent=39 // pred_region
          %s530 = smul.u32 2, %s27
        $region52: #{tpu_custom_call.1} parent=39 // pred_fallthru
          _
      $region40: #{tpu_custom_call.1} parent=5 // pred_fallthru
        _
      %p531 = scmp.le.s32.totalorder 2, %s17
      // Predicated region
      $region53: #{tpu_custom_call.1} parent=5 // pred_check
        %p532 = pneg %p531
      $region54: #{tpu_custom_call.1} parent=5 // pred_check_branch
        %534 = sbr.rel (%p532) target = $region56
      $region55: #{tpu_custom_call.1} parent=5 // pred_region
        %s535 = ssub.s32 %s17, 2
        // Predicated region
        $region57: #{tpu_custom_call.1} parent=55 // pred_check
          %p536 = pneg %p187
        $region58: #{tpu_custom_call.1} parent=55 // pred_check_branch
          %538 = sbr.rel (%p536) target = $region60
        $region59: #{tpu_custom_call.1} parent=55 // pred_region
          %s539 = smul.u32 2, %s29
          %p540 = scmp.lt.s32.totalorder %s28, 1
          %s541 = scalar_select %p540, %s28, 1
          %p542 = scmp.lt.s32.totalorder %s539, 1
          %s543 = scalar_select %p542, %s539, 1
          %s544 = smul.addr %s541, 2
          %s545 = sadd.s32 %s543, %s544
          %s546 = smul.addr %s545, 8
          %s547 = scalar_lea.vmem %s5, %s546
        $region60: #{tpu_custom_call.1} parent=55 // pred_fallthru
          _
      $region56: #{tpu_custom_call.1} parent=5 // pred_fallthru
        _
    $region6: #{tpu_custom_call.1} parent=1 // loop_footer
      %s21 = sadd.s32 1, %s17
    $region7: #{tpu_custom_call.1} parent=1 // loop_footer_branch
      %16 = sbr.rel target = $region3
    $region8: #{tpu_custom_call.1} parent=1 // loop_exit
      _
    %548 = vsyncpa [#allocation3], 1
    %s549 = scalar_lea.sflag [#allocation3], 1
    %550 = vsyncpa %s549, 1
    %551 = vsyncpa [#allocation5], 1
    %s552 = scalar_lea.sflag [#allocation5], 1
    %553 = vsyncpa %s552, 1

</llo_original>
